<compile_context>
chip_gen: v5e
topology: v5e:2x2
jax: 0.10.0
libtpu: 0.0.40
codegen_flags: <defaults>
</compile_context>

<pallas_src>
import functools

import jax
import jax.numpy as jnp
import numpy as np
from jax.experimental import pallas as pl
from jax.experimental.pallas import tpu as pltpu


def _round_up(x, m):
    return ((x + m - 1) // m) * m


def diffusion_gcn_kernel(supT_ref, x_ref, wT_ref, b_ref, o_ref, acc_ref, *,
                         order):
    """DiffusionGCN forward for one batch element (grid axis = batch).

    supT_ref: (S, N_pad, N_pad) bf16   transposed, zero-padded supports
    x_ref   : (Din, N_pad)      bf16   node features, node axis on lanes
    wT_ref  : (K, Dout, Din)    bf16   per-term transposed weights, K=order*S+1
    b_ref   : (Dout, 1)         f32    bias column (broadcast over node lanes)
    o_ref   : (Dout, N_pad)     f32    lane-dense output slab for this batch
    acc_ref : (Dout, N_pad)     f32    VMEM scratch accumulator
    """
    S = supT_ref.shape[0]
    cdt = supT_ref.dtype  # bf16 MXU operand dtype

    # Chebyshev recurrence state is kept in f32; operands are cast to bf16
    # only at the MXU inputs (review: keep 2*x1 - x0 and the accumulator f32).
    x0 = x_ref[...].astype(jnp.float32)                     # (Din, N_pad)

    # k = 0 term: raw features, projected directly (concat-free formulation).
    # Bias broadcasts over the padded node lanes; padded columns are sliced
    # off in the wrapper.
    acc_ref[...] = jnp.dot(wT_ref[0], x0.astype(cdt),
                           preferred_element_type=jnp.float32) + b_ref[...]

    k_idx = 1
    for s in range(S):
        supT = supT_ref[s]                                  # (N_pad, N_pad)
        # x1 = sup @ x0  (node axis on lanes => right-multiply by sup^T).
        x1 = jnp.dot(x0.astype(cdt), supT,
                     preferred_element_type=jnp.float32)
        acc_ref[...] += jnp.dot(wT_ref[k_idx], x1.astype(cdt),
                                preferred_element_type=jnp.float32)
        k_idx += 1
        for _k in range(2, order + 1):
            x2 = 2.0 * jnp.dot(x1.astype(cdt), supT,
                               preferred_element_type=jnp.float32) - x0
            acc_ref[...] += jnp.dot(wT_ref[k_idx], x2.astype(cdt),
                                    preferred_element_type=jnp.float32)
            k_idx += 1
            x1, x0 = x2, x1
        # x0 intentionally carries over to the next support, exactly
        # mirroring the PyTorch reference code.

    o_ref[...] = acc_ref[...].astype(o_ref.dtype)


def diffusion_gcn(supports, x, weight, bias, *, order,
                  compute_dtype=jnp.bfloat16):
    """Wrapper: builds lane-dense layouts and launches the Pallas kernel."""
    sup = jnp.stack(supports, axis=0)                       # (S, N, N)
    S = sup.shape[0]
    B, N, Din = x.shape
    F, Dout = weight.shape
    K = order * S + 1
    assert F == K * Din

    # Node axis padded up to a multiple of 128 lanes (always lane-dense).
    N_pad = _round_up(N, 128)

    # sup^T, zero-padded: x1^T = x0^T @ sup^T keeps the padded columns zero.
    supT = jnp.transpose(sup, (0, 2, 1))
    supT = jnp.pad(supT, ((0, 0), (0, N_pad - N), (0, N_pad - N)))
    supT = supT.astype(compute_dtype)

    # (B, N, Din) -> (B, Din, N_pad): node axis on lanes.
    x_t = jnp.transpose(x, (0, 2, 1))
    x_t = jnp.pad(x_t, ((0, 0), (0, 0), (0, N_pad - N))).astype(compute_dtype)

    # (K*Din, Dout) -> (K, Dout, Din): per-term transposed projection weights.
    wT = jnp.transpose(weight.reshape(K, Din, Dout),
                       (0, 2, 1)).astype(compute_dtype)

    # Bias as a column vector; broadcast over node lanes inside the kernel.
    bias_col = bias.reshape(Dout, 1).astype(jnp.float32)

    kernel = functools.partial(diffusion_gcn_kernel, order=order)

    out_t = pl.pallas_call(
        kernel,
        out_shape=jax.ShapeDtypeStruct((B, Dout, N_pad), x.dtype),
        grid=(B,),
        in_specs=[
            pl.BlockSpec((S, N_pad, N_pad), lambda b: (0, 0, 0)),   # supT
            pl.BlockSpec((None, Din, N_pad), lambda b: (b, 0, 0)),  # x
            pl.BlockSpec((K, Dout, Din), lambda b: (0, 0, 0)),      # wT
            pl.BlockSpec((Dout, 1), lambda b: (0, 0)),              # bias
        ],
        out_specs=pl.BlockSpec((None, Dout, N_pad), lambda b: (b, 0, 0)),
        scratch_shapes=[pltpu.VMEM((Dout, N_pad), jnp.float32)],
        compiler_params=pltpu.CompilerParams(
            dimension_semantics=("parallel",)),
    )(supT, x_t, wT, bias_col)

    # (B, Dout, N_pad) -> (B, N, Dout); wrapper-side layout plumbing only.
    return jnp.transpose(out_t[:, :, :N], (0, 2, 1))


def diffusion_gcn_ref(supports, x, weight, bias, *, order):
    """Pure-JAX (f32) reference mirroring the PyTorch forward exactly."""
    B, N, _ = x.shape
    out = [x]
    x0 = x
    for support in supports:
        x1 = jnp.einsum('ij,bjk->bik', support, x0)
        out.append(x1)
        for _k in range(2, order + 1):
            x2 = 2.0 * jnp.einsum('ij,bjk->bik', support, x1) - x0
            out.append(x2)
            x1, x0 = x2, x1
    feat = jnp.concatenate(out, axis=-1).reshape(B * N, -1)
    y = feat @ weight + bias
    return y.reshape(B, N, weight.shape[1])


if __name__ == "__main__":
    # Small shapes consistent with the module's forward.
    B = 2          # batch
    N = 16         # node_num
    DIN = 4        # dim_in
    DOUT = 32      # dim_out
    ORDER = 2
    S = 2          # number of supports
    F = DIN * (ORDER * S + 1)

    key = jax.random.PRNGKey(0)
    k_x, k_w, k_s0, k_s1 = jax.random.split(key, 4)

    x = jax.random.normal(k_x, (B, N, DIN), dtype=jnp.float32)

    # xavier_normal_(gain=1.414): std = gain * sqrt(2 / (fan_in + fan_out))
    std = 1.414 * np.sqrt(2.0 / (F + DOUT))
    weight = (std * jax.random.normal(k_w, (F, DOUT))).astype(jnp.float32)
    bias = jnp.zeros((DOUT,), dtype=jnp.float32)

    # Two synthetic row-normalized "diffusion" supports.
    def make_support(k):
        a = jnp.abs(jax.random.normal(k, (N, N), dtype=jnp.float32))
        return a / jnp.sum(a, axis=1, keepdims=True)

    supports = [make_support(k_s0), make_support(k_s1)]

    out = diffusion_gcn(supports, x, weight, bias, order=ORDER)
    out = jax.block_until_ready(out)

    ref = diffusion_gcn_ref(supports, x, weight, bias, order=ORDER)
    # Tolerance accounts for bf16 matmul operands (f32 accumulation); a
    # layout/index bug would produce errors of order the output std (~0.6),
    # far above this threshold.
    np.testing.assert_allclose(np.asarray(out), np.asarray(ref),
                               rtol=5e-2, atol=5e-2)

    print("KERNEL_OK")
</pallas_src>

<mosaic_0001>
module attributes {stable_mosaic.version = 11 : i64} {
  func.func @diffusion_gcn_kernel(%arg0: i32, %arg1: memref<2x128x128xbf16, #tpu.memory_space<vmem>>, %arg2: memref<1x4x128xbf16, #tpu.memory_space<vmem>>, %arg3: memref<5x32x4xbf16, #tpu.memory_space<vmem>>, %arg4: memref<32x1xf32, #tpu.memory_space<vmem>>, %arg5: memref<1x32x128xf32, #tpu.memory_space<vmem>>, %arg6: memref<32x128xf32, #tpu.memory_space<vmem>>) attributes {dimension_semantics = [#tpu.dimension_semantics<parallel>], iteration_bounds = array<i64: 2>, scalar_prefetch = 0 : i64, scratch_operands = 1 : i64, tpu.core_type = #tpu.core_type<tc>, window_params = [{pipeline_mode = #tpu.pipeline_mode<synchronous>, transform_indices = @transform_0, window_bounds = array<i64: 2, 128, 128>}, {transform_indices = @transform_1, window_bounds = array<i64: 1, 4, 128>}, {pipeline_mode = #tpu.pipeline_mode<synchronous>, transform_indices = @transform_2, window_bounds = array<i64: 5, 32, 4>}, {pipeline_mode = #tpu.pipeline_mode<synchronous>, transform_indices = @transform_3, window_bounds = array<i64: 32, 1>}, {transform_indices = @transform_4, window_bounds = array<i64: 1, 32, 128>}]} {
    %c0 = arith.constant 0 : index
    %c0_0 = arith.constant 0 : index
    %c0_1 = arith.constant 0 : index
    %0 = vector.load %arg2[%c0, %c0_0, %c0_1] : memref<1x4x128xbf16, #tpu.memory_space<vmem>>, vector<1x4x128xbf16>
    %1 = vector.shape_cast %0 : vector<1x4x128xbf16> to vector<4x128xbf16>
    %2 = arith.extf %1 : vector<4x128xbf16> to vector<4x128xf32>
    %c0_2 = arith.constant 0 : index
    %c0_3 = arith.constant 0 : index
    %c0_4 = arith.constant 0 : index
    %3 = vector.load %arg3[%c0_2, %c0_3, %c0_4] : memref<5x32x4xbf16, #tpu.memory_space<vmem>>, vector<1x32x4xbf16>
    %4 = vector.shape_cast %3 : vector<1x32x4xbf16> to vector<32x4xbf16>
    %5 = arith.truncf %2 : vector<4x128xf32> to vector<4x128xbf16>
    %cst = arith.constant dense<0.000000e+00> : vector<32x128xf32>
    %6 = tpu.matmul %4, %5, %cst {dimension_numbers = #tpu.dot_dimension_numbers<[1], [0], [0], [1], [0, 0, 1, 1], [], []>} : vector<32x4xbf16>, vector<4x128xbf16>, vector<32x128xf32> -> vector<32x128xf32>
    %c0_5 = arith.constant 0 : index
    %c0_6 = arith.constant 0 : index
    %7 = vector.load %arg4[%c0_5, %c0_6] : memref<32x1xf32, #tpu.memory_space<vmem>>, vector<32x1xf32>
    %8 = vector.broadcast %7 : vector<32x1xf32> to vector<32x128xf32>
    %9 = arith.addf %6, %8 : vector<32x128xf32>
    %c0_7 = arith.constant 0 : index
    %c0_8 = arith.constant 0 : index
    %10 = vector.load %arg6[%c0_7, %c0_8] : memref<32x128xf32, #tpu.memory_space<vmem>>, vector<32x128xf32>
    tpu.vector_store %arg6[%c0_7, %c0_8], %9 {strides = array<i32>} : memref<32x128xf32, #tpu.memory_space<vmem>>, vector<32x128xf32>,
    %c0_9 = arith.constant 0 : index
    %c0_10 = arith.constant 0 : index
    %c0_11 = arith.constant 0 : index
    %11 = vector.load %arg1[%c0_9, %c0_10, %c0_11] : memref<2x128x128xbf16, #tpu.memory_space<vmem>>, vector<1x128x128xbf16>
    %12 = vector.shape_cast %11 : vector<1x128x128xbf16> to vector<128x128xbf16>
    %13 = arith.truncf %2 : vector<4x128xf32> to vector<4x128xbf16>
    %cst_12 = arith.constant dense<0.000000e+00> : vector<4x128xf32>
    %14 = tpu.matmul %13, %12, %cst_12 {dimension_numbers = #tpu.dot_dimension_numbers<[1], [0], [0], [1], [0, 0, 1, 1], [], []>} : vector<4x128xbf16>, vector<128x128xbf16>, vector<4x128xf32> -> vector<4x128xf32>
    %c0_13 = arith.constant 0 : index
    %c0_14 = arith.constant 0 : index
    %15 = vector.load %arg6[%c0_13, %c0_14] : memref<32x128xf32, #tpu.memory_space<vmem>>, vector<32x128xf32>
    %c1 = arith.constant 1 : index
    %c0_15 = arith.constant 0 : index
    %c0_16 = arith.constant 0 : index
    %16 = vector.load %arg3[%c1, %c0_15, %c0_16] : memref<5x32x4xbf16, #tpu.memory_space<vmem>>, vector<1x32x4xbf16>
    %17 = vector.shape_cast %16 : vector<1x32x4xbf16> to vector<32x4xbf16>
    %18 = arith.truncf %14 : vector<4x128xf32> to vector<4x128xbf16>
    %cst_17 = arith.constant dense<0.000000e+00> : vector<32x128xf32>
    %19 = tpu.matmul %17, %18, %cst_17 {dimension_numbers = #tpu.dot_dimension_numbers<[1], [0], [0], [1], [0, 0, 1, 1], [], []>} : vector<32x4xbf16>, vector<4x128xbf16>, vector<32x128xf32> -> vector<32x128xf32>
    %20 = arith.addf %15, %19 : vector<32x128xf32>
    %c0_18 = arith.constant 0 : index
    %c0_19 = arith.constant 0 : index
    %21 = vector.load %arg6[%c0_18, %c0_19] : memref<32x128xf32, #tpu.memory_space<vmem>>, vector<32x128xf32>
    tpu.vector_store %arg6[%c0_18, %c0_19], %20 {strides = array<i32>} : memref<32x128xf32, #tpu.memory_space<vmem>>, vector<32x128xf32>,
    %22 = arith.truncf %14 : vector<4x128xf32> to vector<4x128xbf16>
    %cst_20 = arith.constant dense<0.000000e+00> : vector<4x128xf32>
    %23 = tpu.matmul %22, %12, %cst_20 {dimension_numbers = #tpu.dot_dimension_numbers<[1], [0], [0], [1], [0, 0, 1, 1], [], []>} : vector<4x128xbf16>, vector<128x128xbf16>, vector<4x128xf32> -> vector<4x128xf32>
    %cst_21 = arith.constant 2.000000e+00 : f32
    %24 = vector.broadcast %cst_21 : f32 to vector<4x128xf32>
    %25 = arith.mulf %24, %23 : vector<4x128xf32>
    %26 = arith.subf %25, %2 : vector<4x128xf32>
    %c0_22 = arith.constant 0 : index
    %c0_23 = arith.constant 0 : index
    %27 = vector.load %arg6[%c0_22, %c0_23] : memref<32x128xf32, #tpu.memory_space<vmem>>, vector<32x128xf32>
    %c2 = arith.constant 2 : index
    %c0_24 = arith.constant 0 : index
    %c0_25 = arith.constant 0 : index
    %28 = vector.load %arg3[%c2, %c0_24, %c0_25] : memref<5x32x4xbf16, #tpu.memory_space<vmem>>, vector<1x32x4xbf16>
    %29 = vector.shape_cast %28 : vector<1x32x4xbf16> to vector<32x4xbf16>
    %30 = arith.truncf %26 : vector<4x128xf32> to vector<4x128xbf16>
    %cst_26 = arith.constant dense<0.000000e+00> : vector<32x128xf32>
    %31 = tpu.matmul %29, %30, %cst_26 {dimension_numbers = #tpu.dot_dimension_numbers<[1], [0], [0], [1], [0, 0, 1, 1], [], []>} : vector<32x4xbf16>, vector<4x128xbf16>, vector<32x128xf32> -> vector<32x128xf32>
    %32 = arith.addf %27, %31 : vector<32x128xf32>
    %c0_27 = arith.constant 0 : index
    %c0_28 = arith.constant 0 : index
    %33 = vector.load %arg6[%c0_27, %c0_28] : memref<32x128xf32, #tpu.memory_space<vmem>>, vector<32x128xf32>
    tpu.vector_store %arg6[%c0_27, %c0_28], %32 {strides = array<i32>} : memref<32x128xf32, #tpu.memory_space<vmem>>, vector<32x128xf32>,
    %c1_29 = arith.constant 1 : index
    %c0_30 = arith.constant 0 : index
    %c0_31 = arith.constant 0 : index
    %34 = vector.load %arg1[%c1_29, %c0_30, %c0_31] : memref<2x128x128xbf16, #tpu.memory_space<vmem>>, vector<1x128x128xbf16>
    %35 = vector.shape_cast %34 : vector<1x128x128xbf16> to vector<128x128xbf16>
    %36 = arith.truncf %14 : vector<4x128xf32> to vector<4x128xbf16>
    %cst_32 = arith.constant dense<0.000000e+00> : vector<4x128xf32>
    %37 = tpu.matmul %36, %35, %cst_32 {dimension_numbers = #tpu.dot_dimension_numbers<[1], [0], [0], [1], [0, 0, 1, 1], [], []>} : vector<4x128xbf16>, vector<128x128xbf16>, vector<4x128xf32> -> vector<4x128xf32>
    %c0_33 = arith.constant 0 : index
    %c0_34 = arith.constant 0 : index
    %38 = vector.load %arg6[%c0_33, %c0_34] : memref<32x128xf32, #tpu.memory_space<vmem>>, vector<32x128xf32>
    %c3 = arith.constant 3 : index
    %c0_35 = arith.constant 0 : index
    %c0_36 = arith.constant 0 : index
    %39 = vector.load %arg3[%c3, %c0_35, %c0_36] : memref<5x32x4xbf16, #tpu.memory_space<vmem>>, vector<1x32x4xbf16>
    %40 = vector.shape_cast %39 : vector<1x32x4xbf16> to vector<32x4xbf16>
    %41 = arith.truncf %37 : vector<4x128xf32> to vector<4x128xbf16>
    %cst_37 = arith.constant dense<0.000000e+00> : vector<32x128xf32>
    %42 = tpu.matmul %40, %41, %cst_37 {dimension_numbers = #tpu.dot_dimension_numbers<[1], [0], [0], [1], [0, 0, 1, 1], [], []>} : vector<32x4xbf16>, vector<4x128xbf16>, vector<32x128xf32> -> vector<32x128xf32>
    %43 = arith.addf %38, %42 : vector<32x128xf32>
    %c0_38 = arith.constant 0 : index
    %c0_39 = arith.constant 0 : index
    %44 = vector.load %arg6[%c0_38, %c0_39] : memref<32x128xf32, #tpu.memory_space<vmem>>, vector<32x128xf32>
    tpu.vector_store %arg6[%c0_38, %c0_39], %43 {strides = array<i32>} : memref<32x128xf32, #tpu.memory_space<vmem>>, vector<32x128xf32>,
    %45 = arith.truncf %37 : vector<4x128xf32> to vector<4x128xbf16>
    %cst_40 = arith.constant dense<0.000000e+00> : vector<4x128xf32>
    %46 = tpu.matmul %45, %35, %cst_40 {dimension_numbers = #tpu.dot_dimension_numbers<[1], [0], [0], [1], [0, 0, 1, 1], [], []>} : vector<4x128xbf16>, vector<128x128xbf16>, vector<4x128xf32> -> vector<4x128xf32>
    %cst_41 = arith.constant 2.000000e+00 : f32
    %47 = vector.broadcast %cst_41 : f32 to vector<4x128xf32>
    %48 = arith.mulf %47, %46 : vector<4x128xf32>
    %49 = arith.subf %48, %14 : vector<4x128xf32>
    %c0_42 = arith.constant 0 : index
    %c0_43 = arith.constant 0 : index
    %50 = vector.load %arg6[%c0_42, %c0_43] : memref<32x128xf32, #tpu.memory_space<vmem>>, vector<32x128xf32>
    %c4 = arith.constant 4 : index
    %c0_44 = arith.constant 0 : index
    %c0_45 = arith.constant 0 : index
    %51 = vector.load %arg3[%c4, %c0_44, %c0_45] : memref<5x32x4xbf16, #tpu.memory_space<vmem>>, vector<1x32x4xbf16>
    %52 = vector.shape_cast %51 : vector<1x32x4xbf16> to vector<32x4xbf16>
    %53 = arith.truncf %49 : vector<4x128xf32> to vector<4x128xbf16>
    %cst_46 = arith.constant dense<0.000000e+00> : vector<32x128xf32>
    %54 = tpu.matmul %52, %53, %cst_46 {dimension_numbers = #tpu.dot_dimension_numbers<[1], [0], [0], [1], [0, 0, 1, 1], [], []>} : vector<32x4xbf16>, vector<4x128xbf16>, vector<32x128xf32> -> vector<32x128xf32>
    %55 = arith.addf %50, %54 : vector<32x128xf32>
    %c0_47 = arith.constant 0 : index
    %c0_48 = arith.constant 0 : index
    %56 = vector.load %arg6[%c0_47, %c0_48] : memref<32x128xf32, #tpu.memory_space<vmem>>, vector<32x128xf32>
    tpu.vector_store %arg6[%c0_47, %c0_48], %55 {strides = array<i32>} : memref<32x128xf32, #tpu.memory_space<vmem>>, vector<32x128xf32>,
    %c0_49 = arith.constant 0 : index
    %c0_50 = arith.constant 0 : index
    %57 = vector.load %arg6[%c0_49, %c0_50] : memref<32x128xf32, #tpu.memory_space<vmem>>, vector<32x128xf32>
    %c0_51 = arith.constant 0 : index
    %c0_52 = arith.constant 0 : index
    %c0_53 = arith.constant 0 : index
    %58 = vector.load %arg5[%c0_51, %c0_52, %c0_53] : memref<1x32x128xf32, #tpu.memory_space<vmem>>, vector<1x32x128xf32>
    %59 = vector.shape_cast %58 : vector<1x32x128xf32> to vector<32x128xf32>
    %60 = vector.shape_cast %57 : vector<32x128xf32> to vector<1x32x128xf32>
    tpu.vector_store %arg5[%c0_51, %c0_52, %c0_53], %60 {strides = array<i32>} : memref<1x32x128xf32, #tpu.memory_space<vmem>>, vector<1x32x128xf32>,
    return
  }
  func.func @transform_0(%arg0: i32) -> (i32, i32, i32) {
    %c0_i32 = arith.constant 0 : i32
    %c0_i32_0 = arith.constant 0 : i32
    %c0_i32_1 = arith.constant 0 : i32
    %c0_i32_2 = arith.constant 0 : i32
    return %c0_i32, %c0_i32_0, %c0_i32_1 : i32, i32, i32
  }
  func.func @transform_1(%arg0: i32) -> (i32, i32, i32) {
    %c0_i32 = arith.constant 0 : i32
    %c0_i32_0 = arith.constant 0 : i32
    %c0_i32_1 = arith.constant 0 : i32
    return %arg0, %c0_i32, %c0_i32_0 : i32, i32, i32
  }
  func.func @transform_2(%arg0: i32) -> (i32, i32, i32) {
    %c0_i32 = arith.constant 0 : i32
    %c0_i32_0 = arith.constant 0 : i32
    %c0_i32_1 = arith.constant 0 : i32
    %c0_i32_2 = arith.constant 0 : i32
    return %c0_i32, %c0_i32_0, %c0_i32_1 : i32, i32, i32
  }
  func.func @transform_3(%arg0: i32) -> (i32, i32) {
    %c0_i32 = arith.constant 0 : i32
    %c0_i32_0 = arith.constant 0 : i32
    %c0_i32_1 = arith.constant 0 : i32
    return %c0_i32, %c0_i32_0 : i32, i32
  }
  func.func @transform_4(%arg0: i32) -> (i32, i32, i32) {
    %c0_i32 = arith.constant 0 : i32
    %c0_i32_0 = arith.constant 0 : i32
    %c0_i32_1 = arith.constant 0 : i32
    return %arg0, %c0_i32, %c0_i32_0 : i32, i32, i32
  }
}

</mosaic_0001>

<llo_original>
// kernel: tpu_custom_call.1
$region0: #{tpu_custom_call.1}
  #allocation0 [shape = 'u32[]', space=smem, size = 0x4, offset = 0x4, fixed_abs, tag = 'smem constant byte address 0x4 - core index']
  #allocation1 [shape = 'u32[72,128]{1,0:T(1,128)}', space=vmem, size = 0x9000, scoped, tag = 'internal scratch']
  #allocation2 [shape = 'f32[32,128]{1,0:T(8,128)}', space=vmem, size = 0x4000, scoped, tag = 'scratch operand']
  %s0 = inlined_call_operand.hbm [shape: bf16[2,128,128], index: 0, kind: input, shape index: {}]
  %s1 = inlined_call_operand.vmem [shape: bf16[2,4,128], index: 1, kind: input, shape index: {}]
  %s2 = inlined_call_operand.vmem [shape: bf16[5,32,4], index: 2, kind: input, shape index: {}]
  %s3 = inlined_call_operand.vmem [shape: f32[32,1], index: 3, kind: input, shape index: {}]
  %s4 = inlined_call_operand.hbm [shape: f32[2,32,128], index: 4, kind: output, shape index: {}]
  %s5 = sld [smem:[#allocation0]]
  $region53: #{tpu_custom_call.1} parent=0
    _
  %s7 = ssub.s32 1, %s5
  %s8 = scalar_select 0, %s7, %s5
  $region1: #{tpu_custom_call.1} parent=0
    #allocation3 [shape = 'u8[65536]{0}', space=vmem, size = 0x10000, scoped, tag = 'input window, operand 0, single buffered']
    #allocation4 [shape = 's32[2]{0}', space=sflag, size = 0x8, scoped, tag = 'scoped memory for tpu_custom_call.1']
    #allocation5 [shape = 's32[2]{0}', space=sflag, size = 0x8, scoped, tag = 'scoped memory for tpu_custom_call.1']
    #allocation6 [shape = 'u8[32768]{0}', space=vmem, size = 0x8000, scoped, tag = 'output window, operand 0']
    %9 = vsyncpa [#allocation4], 0
    %10 = vsyncpa [#allocation5], 0
    %s11 = scalar_lea.sflag [#allocation5], 1
    %12 = vsyncpa %s11, 0
    loop: start=0, step=1, limit=4
    $region2: #{tpu_custom_call.1} parent=1 // loop_pre_header
      _
    $region3: #{tpu_custom_call.1} parent=1 // loop_header
      %s14 = sphi 0, %s18
      %p15 = scmp.ge.s32.totalorder %s14, 4
      %s22 = sphi 0, %s22
      %s24 = sphi 0, %s22
      %s25 = sphi 0, %s24
      %s39 = sphi 0, %s25
      %s45 = sphi 0, %s47
      %s48 = sphi 0, %s45
      %s49 = sphi 0, %s48
      %s65 = sphi 0, %s49
      %s69 = sphi 0, %s69
      %s71 = sphi 0, %s69
      %s72 = sphi 0, %s71
      %s86 = sphi 0, %s72
      %s90 = sphi 0, %s90
      %s92 = sphi 0, %s90
      %s93 = sphi 0, %s92
      %s107 = sphi 0, %s93
      %s113 = sphi 0, %s115
      %s116 = sphi 0, %s113
      %s117 = sphi 0, %s116
      %s133 = sphi 0, %s117
    $region4: #{tpu_custom_call.1} parent=1 // loop_header_branch
      %17 = sbr.rel (%p15) target = $region8
    $region5: #{tpu_custom_call.1} parent=1 // loop_body
      %s19 = ssub.s32 %s14, 1
      %s20 = ssub.s32 %s14, 2
      %s21 = sadd.s32 %s14, 1
      %s23 = sadd.s32 %s22, 1
      %p26 = scmp.eq.s32.totalorder %s14, 1
      %p27 = scmp.ne.s32.totalorder %s22, %s24
      %p28 = scmp.eq.s32.totalorder %s14, 0
      %p29 = por %p27, %p28
      %p30 = scmp.ne.s32.totalorder %s22, %s24
      %p31 = scmp.eq.s32.totalorder %s19, 1
      %p32 = por %p30, %p31
      %p33 = scmp.ne.s32.totalorder %s24, %s25
      %p34 = scmp.eq.s32.totalorder %s19, 0
      %p35 = por %p33, %p34
      %p36 = scmp.ne.s32.totalorder %s24, %s25
      %p37 = scmp.eq.s32.totalorder %s20, 1
      %p38 = por %p36, %p37
      %p40 = scmp.ne.s32.totalorder %s25, %s39
      %p41 = scmp.eq.s32.totalorder %s20, 0
      %p42 = por %p40, %p41
      %s43 = ssub.s32 %s14, %s21
      %p44 = scmp.eq.s32.totalorder %s43, 0
      %s46 = sadd.s32 %s45, 1
      %s47 = scalar_select %p44, %s45, %s46
      %p50 = pneg %p44
      %p51 = scmp.eq.s32.totalorder %s14, 1
      %p52 = por %p50, %p51
      %p53 = scmp.ne.s32.totalorder %s45, %s48
      %p54 = scmp.eq.s32.totalorder %s14, 0
      %p55 = por %p53, %p54
      %p56 = scmp.ne.s32.totalorder %s45, %s48
      %p57 = scmp.eq.s32.totalorder %s19, 1
      %p58 = por %p56, %p57
      %p59 = scmp.ne.s32.totalorder %s48, %s49
      %p60 = scmp.eq.s32.totalorder %s19, 0
      %p61 = por %p59, %p60
      %p62 = scmp.ne.s32.totalorder %s48, %s49
      %p63 = scmp.eq.s32.totalorder %s20, 1
      %p64 = por %p62, %p63
      %p66 = scmp.ne.s32.totalorder %s49, %s65
      %p67 = scmp.eq.s32.totalorder %s20, 0
      %p68 = por %p66, %p67
      %s70 = sadd.s32 %s69, 1
      %p73 = scmp.eq.s32.totalorder %s14, 1
      %p74 = scmp.ne.s32.totalorder %s69, %s71
      %p75 = scmp.eq.s32.totalorder %s14, 0
      %p76 = por %p74, %p75
      %p77 = scmp.ne.s32.totalorder %s69, %s71
      %p78 = scmp.eq.s32.totalorder %s19, 1
      %p79 = por %p77, %p78
      %p80 = scmp.ne.s32.totalorder %s71, %s72
      %p81 = scmp.eq.s32.totalorder %s19, 0
      %p82 = por %p80, %p81
      %p83 = scmp.ne.s32.totalorder %s71, %s72
      %p84 = scmp.eq.s32.totalorder %s20, 1
      %p85 = por %p83, %p84
      %p87 = scmp.ne.s32.totalorder %s72, %s86
      %p88 = scmp.eq.s32.totalorder %s20, 0
      %p89 = por %p87, %p88
      %s91 = sadd.s32 %s90, 1
      %p94 = scmp.eq.s32.totalorder %s14, 1
      %p95 = scmp.ne.s32.totalorder %s90, %s92
      %p96 = scmp.eq.s32.totalorder %s14, 0
      %p97 = por %p95, %p96
      %p98 = scmp.ne.s32.totalorder %s90, %s92
      %p99 = scmp.eq.s32.totalorder %s19, 1
      %p100 = por %p98, %p99
      %p101 = scmp.ne.s32.totalorder %s92, %s93
      %p102 = scmp.eq.s32.totalorder %s19, 0
      %p103 = por %p101, %p102
      %p104 = scmp.ne.s32.totalorder %s92, %s93
      %p105 = scmp.eq.s32.totalorder %s20, 1
      %p106 = por %p104, %p105
      %p108 = scmp.ne.s32.totalorder %s93, %s107
      %p109 = scmp.eq.s32.totalorder %s20, 0
      %p110 = por %p108, %p109
      %s111 = ssub.s32 %s14, %s21
      %p112 = scmp.eq.s32.totalorder %s111, 0
      %s114 = sadd.s32 %s113, 1
      %s115 = scalar_select %p112, %s113, %s114
      %p118 = pneg %p112
      %p119 = scmp.eq.s32.totalorder %s14, 1
      %p120 = por %p118, %p119
      %p121 = scmp.ne.s32.totalorder %s113, %s116
      %p122 = scmp.eq.s32.totalorder %s14, 0
      %p123 = por %p121, %p122
      %p124 = scmp.ne.s32.totalorder %s113, %s116
      %p125 = scmp.eq.s32.totalorder %s19, 1
      %p126 = por %p124, %p125
      %p127 = scmp.ne.s32.totalorder %s116, %s117
      %p128 = scmp.eq.s32.totalorder %s19, 0
      %p129 = por %p127, %p128
      %p130 = scmp.ne.s32.totalorder %s116, %s117
      %p131 = scmp.eq.s32.totalorder %s20, 1
      %p132 = por %p130, %p131
      %p134 = scmp.ne.s32.totalorder %s117, %s133
      %p135 = scmp.eq.s32.totalorder %s20, 0
      %p136 = por %p134, %p135
      %p137 = scmp.le.s32.totalorder 1, %s14
      %p138 = scmp.lt.s32.totalorder %s14, 3
      %p139 = pnand %p137, %p138
      %p140 = pneg %p139
      // Predicated region
      $region9: #{tpu_custom_call.1} parent=5 // pred_check
        _
      $region10: #{tpu_custom_call.1} parent=5 // pred_check_branch
        %142 = sbr.rel (%p139) target = $region12
      $region11: #{tpu_custom_call.1} parent=5 // pred_region
        %s143 = ssub.s32 %s14, 1
        // Predicated region
        $region13: #{tpu_custom_call.1} parent=11 // pred_check
          %p144 = pneg %p35
        $region14: #{tpu_custom_call.1} parent=11 // pred_check_branch
          %146 = sbr.rel (%p144) target = $region16
        $region15: #{tpu_custom_call.1} parent=11 // pred_region
          %148 = vsyncadd [#allocation4], 0
          %s149 = sshll.u32 %s0, 4
          %s150 = int_to_ptr.hbm [resolvable:$true] %s149
          %s151 = sshll.u32 [#allocation3], 4
          %s152 = int_to_ptr.vmem [resolvable:$true] %s151
          %157 = dma.hbm_to_vmem [thread:$0]  %s150, 2048, %s152, [#allocation4], 64, 64, 4
        $region16: #{tpu_custom_call.1} parent=11 // pred_fallthru
          _
        // Predicated region
        $region17: #{tpu_custom_call.1} parent=11 // pred_check
          %p158 = pneg %p82
        $region18: #{tpu_custom_call.1} parent=11 // pred_check_branch
          %160 = sbr.rel (%p158) target = $region20
        $region19: #{tpu_custom_call.1} parent=11 // pred_region
          _
        $region20: #{tpu_custom_call.1} parent=11 // pred_fallthru
          _
        // Predicated region
        $region21: #{tpu_custom_call.1} parent=11 // pred_check
          %p161 = pneg %p103
        $region22: #{tpu_custom_call.1} parent=11 // pred_check_branch
          %163 = sbr.rel (%p161) target = $region24
        $region23: #{tpu_custom_call.1} parent=11 // pred_region
          _
        $region24: #{tpu_custom_call.1} parent=11 // pred_fallthru
          _
      $region12: #{tpu_custom_call.1} parent=5 // pred_fallthru
        _
      %p164 = scmp.lt.s32.totalorder %s14, 2
      // Predicated region
      $region25: #{tpu_custom_call.1} parent=5 // pred_check
        %p165 = pneg %p164
      $region26: #{tpu_custom_call.1} parent=5 // pred_check_branch
        %167 = sbr.rel (%p165) target = $region28
      $region27: #{tpu_custom_call.1} parent=5 // pred_region
        // Predicated region
        $region29: #{tpu_custom_call.1} parent=27 // pred_check
          %p168 = pneg %p55
        $region30: #{tpu_custom_call.1} parent=27 // pred_check_branch
          %170 = sbr.rel (%p168) target = $region32
        $region31: #{tpu_custom_call.1} parent=27 // pred_region
          %p171 = scmp.lt.s32.totalorder %s14, 1
          %s172 = scalar_select %p171, %s14, 1
          %s173 = smul.addr %s172, 2
          %s174 = scalar_lea.vmem %s1, %s173
        $region32: #{tpu_custom_call.1} parent=27 // pred_fallthru
          _
      $region28: #{tpu_custom_call.1} parent=5 // pred_fallthru
        _
      %p175 = scmp.le.s32.totalorder 1, %s14
      %p176 = scmp.lt.s32.totalorder %s14, 3
      %p177 = pnand %p175, %p176
      %p178 = pneg %p177
      // Predicated region
      $region33: #{tpu_custom_call.1} parent=5 // pred_check
        _
      $region34: #{tpu_custom_call.1} parent=5 // pred_check_branch
        %180 = sbr.rel (%p177) target = $region36
      $region35: #{tpu_custom_call.1} parent=5 // pred_region
        %s181 = ssub.s32 %s14, 1
        // Predicated region
        $region37: #{tpu_custom_call.1} parent=35 // pred_check
          %p182 = pneg %p35
        $region38: #{tpu_custom_call.1} parent=35 // pred_check_branch
          %184 = sbr.rel (%p182) target = $region40
        $region39: #{tpu_custom_call.1} parent=35 // pred_region
          %186 = dma.done [#allocation4], 2048
        $region40: #{tpu_custom_call.1} parent=35 // pred_fallthru
          _
        %p187 = pneg %p35
        %p188 = pneg %p32
        %p189 = scmp.lt.s32.totalorder %s19, 1
        %s190 = scalar_select %p189, %s19, 1
        %s191 = smul.addr %s190, 2
        %s192 = scalar_lea.vmem %s1, %s191
        %p193 = pneg %p61
        %p194 = pneg %p58
        %p195 = pneg %p82
        %p196 = pneg %p79
        %p197 = pneg %p103
        %p198 = pneg %p100
        %p199 = pneg %p129
        %p200 = pneg %p126
        %s201 = sand.u32 %s116, 1
        %s202 = scalar_lea.sflag [#allocation5], %s201
        %s203 = sand.u32 %s116, 1
        %s204 = smul.addr %s203, 32
        %s205 = scalar_lea.vmem [#allocation6], %s204
        %p206 = scmp.lt.s32.totalorder %s19, 1
        %s207 = scalar_select %p206, %s19, 1
        %s208 = smul.addr %s207, 2
        %s209 = scalar_lea.vmem %s1, %s208
        %v211 = vld [vmem:[%s209] sm:$0x3]
        %v212 = vunpack.c.l.bf16 %v211
        %v213 = vld [vmem:[%s2] sm:$0xf]
        %v214 = vld [vmem:[%s2 + $0x4] sm:$0xf]
        %v215 = vld [vmem:[%s2 + $0x8] sm:$0xf]
        %v216 = vld [vmem:[%s2 + $0xc] sm:$0xf]
        %v217 = vld [vmem:[%s3] sm:$0xff]
        %v218 = vld [vmem:[%s3 + $0x8] sm:$0xff]
        %v219 = vld [vmem:[%s3 + $0x10] sm:$0xff]
        %v220 = vld [vmem:[%s3 + $0x18] sm:$0xff]
        %222 = vset.pattern.permute.xlu0 0
        %223 = vperm.xlu0 %222, %v217
        %v224 = vpop.permute.xlu0 %223
        %227 = vset.pattern.permute.xlu0 0
        %228 = vperm.xlu0 %227, %v218
        %v229 = vpop.permute.xlu0 %228
        %232 = vset.pattern.permute.xlu0 0
        %233 = vperm.xlu0 %232, %v219
        %v234 = vpop.permute.xlu0 %233
        %237 = vset.pattern.permute.xlu0 0
        %238 = vperm.xlu0 %237, %v220
        %v239 = vpop.permute.xlu0 %238
        %v245 = vunpack.c.l.b16 %v213
        %v246 = vunpack.c.l.b16 %v214
        %v247 = vunpack.c.l.b16 %v215
        %v248 = vunpack.c.l.b16 %v216
        %v249 = vpack.c.b16 %v246, %v245
        %v250 = vpack.c.b16 %v248, %v247
        %vm251 = vcmask 31744
        %v253 = vsel %vm251, %v249, 0
        %v256 = vsel %vm251, %v250, 0
        %vm258 = vcmask 1041408
        %v260 = vsel %vm258, %v211, 0
        %262 = vmatpush.bf16.msra.mxu0 0
        %263 = vmatpush.bf16.msra.mxu0 0
        %264 = vmatpush.bf16.msra.mxu0 0
        %265 = vmatpush.bf16.msra.mxu0 0
        %266 = vmatpush.bf16.msra.mxu0 0
        %267 = vmatpush.bf16.msra.mxu0 0
        %268 = vmatpush.bf16.msra.mxu0 0
        %269 = vmatpush.bf16.msra.mxu0 %v260
        %270 = vmatmul.bf16.gmra.mxu0 %v253
        %v271 = vpop.f32.mrf.mxu0
        %v272 = vadd.f32 %v224, %v271
        %v273 = vpop.f32.mrf.mxu0
        %v274 = vadd.f32 %v229, %v273
        %275 = vmatmul.bf16.gmra.mxu0 %v256
        %v276 = vpop.f32.mrf.mxu0
        %v277 = vadd.f32 %v234, %v276
        %v278 = vpop.f32.mrf.mxu0
        %v279 = vadd.f32 %v239, %v278
        %280 = vdwg.mxu0
        %281 = vst [vmem:[#allocation2] sm:$0xff] %v272
        %282 = vst [vmem:[#allocation2 + $0x8] sm:$0xff] %v274
        %283 = vst [vmem:[#allocation2 + $0x10] sm:$0xff] %v277
        %284 = vst [vmem:[#allocation2 + $0x18] sm:$0xff] %v279
        %v285 = vld [vmem:[#allocation3] sm:$0xf]
        %v286 = vld [vmem:[#allocation3 + $0x4] sm:$0xf]
        %v287 = vld [vmem:[#allocation3 + $0x8] sm:$0xf]
        %v288 = vld [vmem:[#allocation3 + $0xc] sm:$0xf]
        %v289 = vld [vmem:[#allocation3 + $0x10] sm:$0xf]
        %v290 = vld [vmem:[#allocation3 + $0x14] sm:$0xf]
        %v291 = vld [vmem:[#allocation3 + $0x18] sm:$0xf]
        %v292 = vld [vmem:[#allocation3 + $0x1c] sm:$0xf]
        %v293 = vld [vmem:[#allocation3 + $0x20] sm:$0xf]
        %v294 = vld [vmem:[#allocation3 + $0x24] sm:$0xf]
        %v295 = vld [vmem:[#allocation3 + $0x28] sm:$0xf]
        %v296 = vld [vmem:[#allocation3 + $0x2c] sm:$0xf]
        %v297 = vld [vmem:[#allocation3 + $0x30] sm:$0xf]
        %v298 = vld [vmem:[#allocation3 + $0x34] sm:$0xf]
        %v299 = vld [vmem:[#allocation3 + $0x38] sm:$0xf]
        %v300 = vld [vmem:[#allocation3 + $0x3c] sm:$0xf]
        %v317 = vunpack.c.l.b16 %v285
        %v318 = vunpack.c.l.b16 %v286
        %v319 = vunpack.c.l.b16 %v287
        %v320 = vunpack.c.l.b16 %v288
        %v321 = vunpack.c.l.b16 %v289
        %v322 = vunpack.c.l.b16 %v290
        %v323 = vunpack.c.l.b16 %v291
        %v324 = vunpack.c.l.b16 %v292
        %v325 = vunpack.c.l.b16 %v293
        %v326 = vunpack.c.l.b16 %v294
        %v327 = vunpack.c.l.b16 %v295
        %v328 = vunpack.c.l.b16 %v296
        %v329 = vunpack.c.l.b16 %v297
        %v330 = vunpack.c.l.b16 %v298
        %v331 = vunpack.c.l.b16 %v299
        %v332 = vunpack.c.l.b16 %v300
        %v333 = vpack.c.b16 %v318, %v317
        %v334 = vpack.c.b16 %v320, %v319
        %v335 = vpack.c.b16 %v322, %v321
        %v336 = vpack.c.b16 %v324, %v323
        %v337 = vpack.c.b16 %v326, %v325
        %v338 = vpack.c.b16 %v328, %v327
        %v339 = vpack.c.b16 %v330, %v329
        %v340 = vpack.c.b16 %v332, %v331
        %349 = vmatpush.bf16.msra.mxu0 %v340
        %350 = vmatpush.bf16.msra.mxu0 %v339
        %351 = vmatpush.bf16.msra.mxu0 %v338
        %352 = vmatpush.bf16.msra.mxu0 %v337
        %353 = vmatpush.bf16.msra.mxu0 %v336
        %354 = vmatpush.bf16.msra.mxu0 %v335
        %355 = vmatpush.bf16.msra.mxu0 %v334
        %356 = vmatpush.bf16.msra.mxu0 %v333
        %357 = vmatmul.bf16.gmra.mxu0 %v211
        %v358 = vpop.f32.mrf.mxu0
        %v359 = vadd.f32 0.0, %v358
        %v360 = vpop.f32.mrf.mxu0
        %361 = vdwg.mxu0
        %v362 = vld [vmem:[#allocation2] sm:$0xff]
        %v363 = vld [vmem:[#allocation2 + $0x8] sm:$0xff]
        %v364 = vld [vmem:[#allocation2 + $0x10] sm:$0xff]
        %v365 = vld [vmem:[#allocation2 + $0x18] sm:$0xff]
        %s366 = scalar_lea.vmem %s2, 16
        %v367 = vld [vmem:[%s366] sm:$0xf]
        %v368 = vld [vmem:[%s366 + $0x4] sm:$0xf]
        %v369 = vld [vmem:[%s366 + $0x8] sm:$0xf]
        %v370 = vld [vmem:[%s366 + $0xc] sm:$0xf]
        %v371 = vpack.c.bf16 %v359, %v359
        %v376 = vunpack.c.l.b16 %v367
        %v377 = vunpack.c.l.b16 %v368
        %v378 = vunpack.c.l.b16 %v369
        %v379 = vunpack.c.l.b16 %v370
        %v380 = vpack.c.b16 %v377, %v376
        %v381 = vpack.c.b16 %v379, %v378
        %v383 = vsel %vm251, %v380, 0
        %v386 = vsel %vm251, %v381, 0
        %v389 = vsel %vm258, %v371, 0
        %391 = vmatpush.bf16.msra.mxu0 0
        %392 = vmatpush.bf16.msra.mxu0 0
        %393 = vmatpush.bf16.msra.mxu0 0
        %394 = vmatpush.bf16.msra.mxu0 0
        %395 = vmatpush.bf16.msra.mxu0 0
        %396 = vmatpush.bf16.msra.mxu0 0
        %397 = vmatpush.bf16.msra.mxu0 0
        %398 = vmatpush.bf16.msra.mxu0 %v389
        %399 = vmatmul.bf16.gmra.mxu0 %v383
        %v400 = vpop.f32.mrf.mxu0
        %v401 = vadd.f32 0.0, %v400
        %v402 = vpop.f32.mrf.mxu0
        %v403 = vadd.f32 0.0, %v402
        %404 = vmatmul.bf16.gmra.mxu0 %v386
        %v405 = vpop.f32.mrf.mxu0
        %v406 = vadd.f32 0.0, %v405
        %v407 = vpop.f32.mrf.mxu0
        %v408 = vadd.f32 0.0, %v407
        %409 = vdwg.mxu0
        %v410 = vadd.f32 %v362, %v401
        %v411 = vadd.f32 %v363, %v403
        %v412 = vadd.f32 %v364, %v406
        %v413 = vadd.f32 %v365, %v408
        %414 = vst [vmem:[#allocation2] sm:$0xff] %v410
        %415 = vst [vmem:[#allocation2 + $0x8] sm:$0xff] %v411
        %416 = vst [vmem:[#allocation2 + $0x10] sm:$0xff] %v412
        %417 = vst [vmem:[#allocation2 + $0x18] sm:$0xff] %v413
        %418 = vmatpush.bf16.msra.mxu0 %v340
        %419 = vmatpush.bf16.msra.mxu0 %v339
        %420 = vmatpush.bf16.msra.mxu0 %v338
        %421 = vmatpush.bf16.msra.mxu0 %v337
        %422 = vmatpush.bf16.msra.mxu0 %v336
        %423 = vmatpush.bf16.msra.mxu0 %v335
        %424 = vmatpush.bf16.msra.mxu0 %v334
        %425 = vmatpush.bf16.msra.mxu0 %v333
        %426 = vmatmul.bf16.gmra.mxu0 %v371
        %v427 = vpop.f32.mrf.mxu0
        %v428 = vadd.f32 0.0, %v427
        %v429 = vpop.f32.mrf.mxu0
        %430 = vdwg.mxu0
        %v431 = vmul.f32 %v428, 2.0
        %v432 = vsub.f32 %v431, %v212
        %v433 = vld [vmem:[#allocation2] sm:$0xff]
        %v434 = vld [vmem:[#allocation2 + $0x8] sm:$0xff]
        %v435 = vld [vmem:[#allocation2 + $0x10] sm:$0xff]
        %v436 = vld [vmem:[#allocation2 + $0x18] sm:$0xff]
        %s437 = scalar_lea.vmem %s2, 32
        %v438 = vld [vmem:[%s437] sm:$0xf]
        %v439 = vld [vmem:[%s437 + $0x4] sm:$0xf]
        %v440 = vld [vmem:[%s437 + $0x8] sm:$0xf]
        %v441 = vld [vmem:[%s437 + $0xc] sm:$0xf]
        %v442 = vpack.c.bf16 %v432, %v432
        %v447 = vunpack.c.l.b16 %v438
        %v448 = vunpack.c.l.b16 %v439
        %v449 = vunpack.c.l.b16 %v440
        %v450 = vunpack.c.l.b16 %v441
        %v451 = vpack.c.b16 %v448, %v447
        %v452 = vpack.c.b16 %v450, %v449
        %v454 = vsel %vm251, %v451, 0
        %v457 = vsel %vm251, %v452, 0
        %v460 = vsel %vm258, %v442, 0
        %462 = vmatpush.bf16.msra.mxu0 0
        %463 = vmatpush.bf16.msra.mxu0 0
        %464 = vmatpush.bf16.msra.mxu0 0
        %465 = vmatpush.bf16.msra.mxu0 0
        %466 = vmatpush.bf16.msra.mxu0 0
        %467 = vmatpush.bf16.msra.mxu0 0
        %468 = vmatpush.bf16.msra.mxu0 0
        %469 = vmatpush.bf16.msra.mxu0 %v460
        %470 = vmatmul.bf16.gmra.mxu0 %v454
        %v471 = vpop.f32.mrf.mxu0
        %v472 = vadd.f32 0.0, %v471
        %v473 = vpop.f32.mrf.mxu0
        %v474 = vadd.f32 0.0, %v473
        %475 = vmatmul.bf16.gmra.mxu0 %v457
        %v476 = vpop.f32.mrf.mxu0
        %v477 = vadd.f32 0.0, %v476
        %v478 = vpop.f32.mrf.mxu0
        %v479 = vadd.f32 0.0, %v478
        %480 = vdwg.mxu0
        %v481 = vadd.f32 %v433, %v472
        %v482 = vadd.f32 %v434, %v474
        %v483 = vadd.f32 %v435, %v477
        %v484 = vadd.f32 %v436, %v479
        %485 = vst [vmem:[#allocation2] sm:$0xff] %v481
        %486 = vst [vmem:[#allocation2 + $0x8] sm:$0xff] %v482
        %487 = vst [vmem:[#allocation2 + $0x10] sm:$0xff] %v483
        %488 = vst [vmem:[#allocation2 + $0x18] sm:$0xff] %v484
        %s489 = scalar_lea.vmem [#allocation3], 64
        %v490 = vld [vmem:[%s489] sm:$0xf]
        %v491 = vld [vmem:[%s489 + $0x4] sm:$0xf]
        %v492 = vld [vmem:[%s489 + $0x8] sm:$0xf]
        %v493 = vld [vmem:[%s489 + $0xc] sm:$0xf]
        %v494 = vld [vmem:[%s489 + $0x10] sm:$0xf]
        %v495 = vld [vmem:[%s489 + $0x14] sm:$0xf]
        %v496 = vld [vmem:[%s489 + $0x18] sm:$0xf]
        %v497 = vld [vmem:[%s489 + $0x1c] sm:$0xf]
        %v498 = vld [vmem:[%s489 + $0x20] sm:$0xf]
        %v499 = vld [vmem:[%s489 + $0x24] sm:$0xf]
        %v500 = vld [vmem:[%s489 + $0x28] sm:$0xf]
        %v501 = vld [vmem:[%s489 + $0x2c] sm:$0xf]
        %v502 = vld [vmem:[%s489 + $0x30] sm:$0xf]
        %v503 = vld [vmem:[%s489 + $0x34] sm:$0xf]
        %v504 = vld [vmem:[%s489 + $0x38] sm:$0xf]
        %v505 = vld [vmem:[%s489 + $0x3c] sm:$0xf]
        %v522 = vunpack.c.l.b16 %v490
        %v523 = vunpack.c.l.b16 %v491
        %v524 = vunpack.c.l.b16 %v492
        %v525 = vunpack.c.l.b16 %v493
        %v526 = vunpack.c.l.b16 %v494
        %v527 = vunpack.c.l.b16 %v495
        %v528 = vunpack.c.l.b16 %v496
        %v529 = vunpack.c.l.b16 %v497
        %v530 = vunpack.c.l.b16 %v498
        %v531 = vunpack.c.l.b16 %v499
        %v532 = vunpack.c.l.b16 %v500
        %v533 = vunpack.c.l.b16 %v501
        %v534 = vunpack.c.l.b16 %v502
        %v535 = vunpack.c.l.b16 %v503
        %v536 = vunpack.c.l.b16 %v504
        %v537 = vunpack.c.l.b16 %v505
        %v538 = vpack.c.b16 %v523, %v522
        %v539 = vpack.c.b16 %v525, %v524
        %v540 = vpack.c.b16 %v527, %v526
        %v541 = vpack.c.b16 %v529, %v528
        %v542 = vpack.c.b16 %v531, %v530
        %v543 = vpack.c.b16 %v533, %v532
        %v544 = vpack.c.b16 %v535, %v534
        %v545 = vpack.c.b16 %v537, %v536
        %554 = vmatpush.bf16.msra.mxu0 %v545
        %555 = vmatpush.bf16.msra.mxu0 %v544
        %556 = vmatpush.bf16.msra.mxu0 %v543
        %557 = vmatpush.bf16.msra.mxu0 %v542
        %558 = vmatpush.bf16.msra.mxu0 %v541
        %559 = vmatpush.bf16.msra.mxu0 %v540
        %560 = vmatpush.bf16.msra.mxu0 %v539
        %561 = vmatpush.bf16.msra.mxu0 %v538
        %562 = vmatmul.bf16.gmra.mxu0 %v371
        %v563 = vpop.f32.mrf.mxu0
        %v564 = vadd.f32 0.0, %v563
        %v565 = vpop.f32.mrf.mxu0
        %566 = vdwg.mxu0
        %v567 = vld [vmem:[#allocation2] sm:$0xff]
        %v568 = vld [vmem:[#allocation2 + $0x8] sm:$0xff]
        %v569 = vld [vmem:[#allocation2 + $0x10] sm:$0xff]
        %v570 = vld [vmem:[#allocation2 + $0x18] sm:$0xff]
        %s571 = scalar_lea.vmem %s2, 48
        %v572 = vld [vmem:[%s571] sm:$0xf]
        %v573 = vld [vmem:[%s571 + $0x4] sm:$0xf]
        %v574 = vld [vmem:[%s571 + $0x8] sm:$0xf]
        %v575 = vld [vmem:[%s571 + $0xc] sm:$0xf]
        %v576 = vpack.c.bf16 %v564, %v564
        %v581 = vunpack.c.l.b16 %v572
        %v582 = vunpack.c.l.b16 %v573
        %v583 = vunpack.c.l.b16 %v574
        %v584 = vunpack.c.l.b16 %v575
        %v585 = vpack.c.b16 %v582, %v581
        %v586 = vpack.c.b16 %v584, %v583
        %v588 = vsel %vm251, %v585, 0
        %v591 = vsel %vm251, %v586, 0
        %v594 = vsel %vm258, %v576, 0
        %596 = vmatpush.bf16.msra.mxu0 0
        %597 = vmatpush.bf16.msra.mxu0 0
        %598 = vmatpush.bf16.msra.mxu0 0
        %599 = vmatpush.bf16.msra.mxu0 0
        %600 = vmatpush.bf16.msra.mxu0 0
        %601 = vmatpush.bf16.msra.mxu0 0
        %602 = vmatpush.bf16.msra.mxu0 0
        %603 = vmatpush.bf16.msra.mxu0 %v594
        %604 = vmatmul.bf16.gmra.mxu0 %v588
        %v605 = vpop.f32.mrf.mxu0
        %v606 = vadd.f32 0.0, %v605
        %v607 = vpop.f32.mrf.mxu0
        %v608 = vadd.f32 0.0, %v607
        %609 = vmatmul.bf16.gmra.mxu0 %v591
        %v610 = vpop.f32.mrf.mxu0
        %v611 = vadd.f32 0.0, %v610
        %v612 = vpop.f32.mrf.mxu0
        %v613 = vadd.f32 0.0, %v612
        %614 = vdwg.mxu0
        %v615 = vadd.f32 %v567, %v606
        %v616 = vadd.f32 %v568, %v608
        %v617 = vadd.f32 %v569, %v611
        %v618 = vadd.f32 %v570, %v613
        %619 = vst [vmem:[#allocation2] sm:$0xff] %v615
        %620 = vst [vmem:[#allocation2 + $0x8] sm:$0xff] %v616
        %621 = vst [vmem:[#allocation2 + $0x10] sm:$0xff] %v617
        %622 = vst [vmem:[#allocation2 + $0x18] sm:$0xff] %v618
        %623 = vmatpush.bf16.msra.mxu0 %v545
        %624 = vmatpush.bf16.msra.mxu0 %v544
        %625 = vmatpush.bf16.msra.mxu0 %v543
        %626 = vmatpush.bf16.msra.mxu0 %v542
        %627 = vmatpush.bf16.msra.mxu0 %v541
        %628 = vmatpush.bf16.msra.mxu0 %v540
        %629 = vmatpush.bf16.msra.mxu0 %v539
        %630 = vmatpush.bf16.msra.mxu0 %v538
        %631 = vmatmul.bf16.gmra.mxu0 %v576
        %v632 = vpop.f32.mrf.mxu0
        %v633 = vadd.f32 0.0, %v632
        %v634 = vpop.f32.mrf.mxu0
        %635 = vdwg.mxu0
        %v636 = vmul.f32 %v633, 2.0
        %v637 = vsub.f32 %v636, %v359
        %v638 = vld [vmem:[#allocation2] sm:$0xff]
        %v639 = vld [vmem:[#allocation2 + $0x8] sm:$0xff]
        %v640 = vld [vmem:[#allocation2 + $0x10] sm:$0xff]
        %v641 = vld [vmem:[#allocation2 + $0x18] sm:$0xff]
        %s642 = scalar_lea.vmem %s2, 64
        %v643 = vld [vmem:[%s642] sm:$0xf]
        %v644 = vld [vmem:[%s642 + $0x4] sm:$0xf]
        %v645 = vld [vmem:[%s642 + $0x8] sm:$0xf]
        %v646 = vld [vmem:[%s642 + $0xc] sm:$0xf]
        %v647 = vpack.c.bf16 %v637, %v637
        %v652 = vunpack.c.l.b16 %v643
        %v653 = vunpack.c.l.b16 %v644
        %v654 = vunpack.c.l.b16 %v645
        %v655 = vunpack.c.l.b16 %v646
        %v656 = vpack.c.b16 %v653, %v652
        %v657 = vpack.c.b16 %v655, %v654
        %v659 = vsel %vm251, %v656, 0
        %v662 = vsel %vm251, %v657, 0
        %v665 = vsel %vm258, %v647, 0
        %667 = vmatpush.bf16.msra.mxu0 0
        %668 = vmatpush.bf16.msra.mxu0 0
        %669 = vmatpush.bf16.msra.mxu0 0
        %670 = vmatpush.bf16.msra.mxu0 0
        %671 = vmatpush.bf16.msra.mxu0 0
        %672 = vmatpush.bf16.msra.mxu0 0
        %673 = vmatpush.bf16.msra.mxu0 0
        %674 = vmatpush.bf16.msra.mxu0 %v665
        %675 = vmatmul.bf16.gmra.mxu0 %v659
        %v676 = vpop.f32.mrf.mxu0
        %v677 = vadd.f32 0.0, %v676
        %v678 = vpop.f32.mrf.mxu0
        %v679 = vadd.f32 0.0, %v678
        %680 = vmatmul.bf16.gmra.mxu0 %v662
        %v681 = vpop.f32.mrf.mxu0
        %v682 = vadd.f32 0.0, %v681
        %v683 = vpop.f32.mrf.mxu0
        %v684 = vadd.f32 0.0, %v683
        %685 = vdwg.mxu0
        %v686 = vadd.f32 %v638, %v677
        %v687 = vadd.f32 %v639, %v679
        %v688 = vadd.f32 %v640, %v682
        %v689 = vadd.f32 %v641, %v684
        %690 = vst [vmem:[#allocation2] sm:$0xff] %v686
        %691 = vst [vmem:[#allocation2 + $0x8] sm:$0xff] %v687
        %692 = vst [vmem:[#allocation2 + $0x10] sm:$0xff] %v688
        %693 = vst [vmem:[#allocation2 + $0x18] sm:$0xff] %v689
        %v694 = vld [vmem:[#allocation2] sm:$0xff]
        %v695 = vld [vmem:[#allocation2 + $0x8] sm:$0xff]
        %v696 = vld [vmem:[#allocation2 + $0x10] sm:$0xff]
        %v697 = vld [vmem:[#allocation2 + $0x18] sm:$0xff]
        %698 = vst [vmem:[%s205] sm:$0xff] %v694
        %699 = vst [vmem:[%s205 + $0x8] sm:$0xff] %v695
        %700 = vst [vmem:[%s205 + $0x10] sm:$0xff] %v696
        %701 = vst [vmem:[%s205 + $0x18] sm:$0xff] %v697
        %s702 = sand.u32 %s116, 1
        %s703 = scalar_lea.sflag [#allocation5], %s702
        %s704 = sand.u32 %s116, 1
        %s705 = smul.addr %s704, 32
        %s706 = scalar_lea.vmem [#allocation6], %s705
        // Predicated region
        $region41: #{tpu_custom_call.1} parent=35 // pred_check
          %p707 = pneg %p126
        $region42: #{tpu_custom_call.1} parent=35 // pred_check_branch
          %709 = sbr.rel (%p707) target = $region44
        $region43: #{tpu_custom_call.1} parent=35 // pred_region
          %711 = vsyncadd %s703, 0
          %s712 = smul.addr %s19, 4
          %s713 = smul.addr %s712, 8
          %s714 = scalar_lea.hbm %s4, %s713
          %s715 = sshll.u32 %s706, 4
          %s716 = int_to_ptr.vmem [resolvable:$true] %s715
          %s717 = sshll.u32 %s714, 4
          %s718 = int_to_ptr.hbm [resolvable:$true] %s717
          %723 = dma.vmem_to_hbm [thread:$0]  %s716, 512, %s718, %s703, 128, 128, 8
        $region44: #{tpu_custom_call.1} parent=35 // pred_fallthru
          _
      $region36: #{tpu_custom_call.1} parent=5 // pred_fallthru
        _
      %p724 = scmp.le.s32.totalorder 2, %s14
      // Predicated region
      $region45: #{tpu_custom_call.1} parent=5 // pred_check
        %p725 = pneg %p724
      $region46: #{tpu_custom_call.1} parent=5 // pred_check_branch
        %727 = sbr.rel (%p725) target = $region48
      $region47: #{tpu_custom_call.1} parent=5 // pred_region
        %s728 = ssub.s32 %s14, 2
        // Predicated region
        $region49: #{tpu_custom_call.1} parent=47 // pred_check
          %p729 = pneg %p132
        $region50: #{tpu_custom_call.1} parent=47 // pred_check_branch
          %731 = sbr.rel (%p729) target = $region52
        $region51: #{tpu_custom_call.1} parent=47 // pred_region
          %s732 = sand.u32 %s117, 1
          %s733 = scalar_lea.sflag [#allocation5], %s732
          %s734 = sand.u32 %s117, 1
          %s735 = smul.addr %s734, 32
          %s736 = scalar_lea.vmem [#allocation6], %s735
          %738 = dma.done %s733, 512
        $region52: #{tpu_custom_call.1} parent=47 // pred_fallthru
          _
      $region48: #{tpu_custom_call.1} parent=5 // pred_fallthru
        _
    $region6: #{tpu_custom_call.1} parent=1 // loop_footer
      %s18 = sadd.s32 1, %s14
    $region7: #{tpu_custom_call.1} parent=1 // loop_footer_branch
      %13 = sbr.rel target = $region3
    $region8: #{tpu_custom_call.1} parent=1 // loop_exit
      _
    %739 = vsyncpa [#allocation4], 1
    %s740 = scalar_lea.sflag [#allocation4], 1
    %741 = vsyncpa %s740, 1
    %742 = vsyncpa [#allocation5], 1
    %s743 = scalar_lea.sflag [#allocation5], 1
    %744 = vsyncpa %s743, 1

</llo_original>
